<compile_context>
chip_gen: v5e
topology: v5e:2x2
jax: 0.10.0
libtpu: 0.0.40
codegen_flags: <defaults>
</compile_context>

<pallas_src>
import functools

import jax
import jax.numpy as jnp
from jax.experimental import pallas as pl
from jax.experimental.pallas import tpu as pltpu

LANE = 128
SUBLANE = 8


def _round_up(n, m):
    return ((n + m - 1) // m) * m


def _autoencoder_kernel(x_ref,
                        w1_ref, b1_ref,
                        w2_ref, b2_ref,
                        w3_ref, b3_ref,
                        w4_ref, b4_ref,
                        w5_ref, b5_ref,
                        w6_ref, b6_ref,
                        out_ref):
    """Fused encoder+decoder for one (tb, input_dim) batch tile.

    Six back-to-back linears in VMEM.  Dot operands are bf16 (MXU-native) with
    f32 accumulation; elementwise work (bias, ReLU, store) stays f32.
    """
    h = x_ref[...]                                    # (tb, input_dim) f32

    def linear(h, w_ref, b_ref, relu):
        y = jnp.dot(h.astype(jnp.bfloat16), w_ref[...],
                    preferred_element_type=jnp.float32)
        y = y + b_ref[...]                            # (1, out) f32 bias broadcast
        if relu:
            y = jnp.maximum(y, 0.0)
        return y

    # Encoder: input_dim -> 128 (logical 64) -> 128 (32) -> 128 (16)
    h = linear(h, w1_ref, b1_ref, relu=True)
    h = linear(h, w2_ref, b2_ref, relu=True)
    h = linear(h, w3_ref, b3_ref, relu=True)
    # Decoder: 128 (16) -> 128 (32) -> 128 (64) -> input_dim
    h = linear(h, w4_ref, b4_ref, relu=True)
    h = linear(h, w5_ref, b5_ref, relu=True)
    h = linear(h, w6_ref, b6_ref, relu=False)

    out_ref[...] = h.astype(out_ref.dtype)            # (tb, input_dim)


def _pad_params(params, input_dim):
    """Zero-pad hidden feature dims to 128 lanes; keep input/output dims logical.

    Weights are stored bf16 (MXU-native, halves weight DMA/VMEM); biases stay
    f32.  Padding is mathematically inert: padded bias entries are 0, ReLU(0)=0,
    and the corresponding weight rows of the next layer are 0.
    """
    dims = [input_dim, 64, 32, 16, 32, 64, input_dim]
    pdims = [input_dim] + [_round_up(d, LANE) for d in dims[1:-1]] + [input_dim]
    padded = []
    for i, (w, b) in enumerate(params):
        pin, pout = pdims[i], pdims[i + 1]
        w = jnp.asarray(w, jnp.float32)
        b = jnp.asarray(b, jnp.float32).reshape(1, -1)
        wp = jnp.zeros((pin, pout), jnp.float32).at[:w.shape[0], :w.shape[1]].set(w)
        bp = jnp.zeros((1, pout), jnp.float32).at[:, :b.shape[1]].set(b)
        padded.append((wp.astype(jnp.bfloat16), bp))
    return padded, pdims


@functools.partial(jax.jit, static_argnames=("tb_max",))
def autoencoder_forward(x, params, *, tb_max=1024):
    """x: (B, input_dim) float32. params: list of 6 (W, b) with W (in, out)."""
    batch, input_dim = x.shape
    pparams, pdims = _pad_params(params, input_dim)

    # Batch tile: large enough to amortize the ~0.35 us per-grid-step overhead
    # and approach HBM roofline, multiple of 8 sublanes, but capped at
    # ceil(batch/2) so grid >= 2 and the "parallel" axis shards across both
    # v7x TensorCores.
    half = -(-batch // 2)
    tb = min(tb_max, max(SUBLANE, _round_up(half, SUBLANE)))
    b_pad = _round_up(batch, tb)

    # Row-pad the batch only (no column/lane padding in HBM).
    x_p = x.astype(jnp.float32)
    if b_pad != batch:
        x_p = jnp.pad(x_p, ((0, b_pad - batch), (0, 0)))

    flat = [x_p]
    # Last block dim == full array dim (input_dim), so a <128 lane block is legal.
    in_specs = [pl.BlockSpec((tb, input_dim), lambda i: (i, 0))]
    for (w, b) in pparams:
        flat += [w, b]
        # Constant index_map -> weights/biases fetched once, VMEM-resident for
        # the whole grid (no re-DMA per step).
        in_specs.append(pl.BlockSpec(w.shape, lambda i: (0, 0)))
        in_specs.append(pl.BlockSpec(b.shape, lambda i: (0, 0)))

    # VMEM budget: 2x (potential double-buffer) resident weights/biases,
    # double-buffered x/out tiles, live f32/bf16 activation intermediates,
    # plus headroom.  Stays ~10-16 MiB at tb=1024, safe on all generations.
    weight_bytes = sum(w.size * w.dtype.itemsize + b.size * b.dtype.itemsize
                       for (w, b) in pparams)
    io_bytes = 2 * 2 * tb * input_dim * 4          # x + out, double-buffered
    act_bytes = 12 * tb * LANE * 4                 # live intermediates
    vmem_limit = int(2 * weight_bytes + io_bytes + act_bytes + (8 << 20))

    flops = 2 * b_pad * sum(pdims[i] * pdims[i + 1] for i in range(6))
    bytes_accessed = 2 * b_pad * input_dim * 4 + weight_bytes

    out = pl.pallas_call(
        _autoencoder_kernel,
        out_shape=jax.ShapeDtypeStruct((b_pad, input_dim), jnp.float32),
        grid=(b_pad // tb,),
        in_specs=in_specs,
        out_specs=pl.BlockSpec((tb, input_dim), lambda i: (i, 0)),
        compiler_params=pltpu.CompilerParams(
            dimension_semantics=("parallel",),     # megacore sharding on v7x
            vmem_limit_bytes=vmem_limit,
        ),
        cost_estimate=pl.CostEstimate(
            flops=flops, transcendentals=0, bytes_accessed=bytes_accessed),
    )(*flat)

    # Drop the batch row padding.
    return out[:batch]


def init_params(input_dim, key):
    """Deterministic init mirroring nn.Linear default (uniform +/- 1/sqrt(fan_in))."""
    dims = [input_dim, 64, 32, 16, 32, 64, input_dim]
    params = []
    for i in range(6):
        fan_in, fan_out = dims[i], dims[i + 1]
        key, kw, kb = jax.random.split(key, 3)
        bound = 1.0 / jnp.sqrt(jnp.float32(fan_in))
        w = jax.random.uniform(kw, (fan_in, fan_out), jnp.float32, -bound, bound)
        b = jax.random.uniform(kb, (1, fan_out), jnp.float32, -bound, bound)
        params.append((w, b))
    return params


def reference_forward(x, params):
    """Plain-JAX f32 reference (same math as the PyTorch module)."""
    h = x
    for i, (w, b) in enumerate(params):
        h = h @ w + b
        if i < 5:
            h = jnp.maximum(h, 0.0)
    return h


if __name__ == "__main__":
    key = jax.random.PRNGKey(0)
    input_dim = 32

    key, kx = jax.random.split(key)
    params = init_params(input_dim, key)

    # Tolerances loosened vs. the pure-f32 version: bf16 matmul operands give
    # ~1e-3..1e-2 relative error through 6 layers.
    ATOL = RTOL = 3e-2

    # Small primary test (single tile, grid=1).
    batch = 8
    x = jax.random.normal(kx, (batch, input_dim), jnp.float32)
    out = jax.block_until_ready(autoencoder_forward(x, params))
    ref = reference_forward(x, params)
    assert out.shape == (batch, input_dim)
    assert jnp.allclose(out, ref, atol=ATOL, rtol=RTOL), "mismatch vs reference (batch=8)"

    # Second test exercising batch tiling + row padding (grid=2, non-multiple batch).
    key, kx2 = jax.random.split(key)
    batch2 = 300
    x2 = jax.random.normal(kx2, (batch2, input_dim), jnp.float32)
    out2 = jax.block_until_ready(autoencoder_forward(x2, params))
    ref2 = reference_forward(x2, params)
    assert out2.shape == (batch2, input_dim)
    assert jnp.allclose(out2, ref2, atol=ATOL, rtol=RTOL), "mismatch vs reference (batch=300)"

    print("KERNEL_OK")
</pallas_src>

<mosaic_0001>
module attributes {stable_mosaic.version = 11 : i64} {
  func.func @_autoencoder_kernel(%arg0: i32, %arg1: memref<8x32xf32, #tpu.memory_space<vmem>>, %arg2: memref<32x128xbf16, #tpu.memory_space<vmem>>, %arg3: memref<1x128xf32, #tpu.memory_space<vmem>>, %arg4: memref<128x128xbf16, #tpu.memory_space<vmem>>, %arg5: memref<1x128xf32, #tpu.memory_space<vmem>>, %arg6: memref<128x128xbf16, #tpu.memory_space<vmem>>, %arg7: memref<1x128xf32, #tpu.memory_space<vmem>>, %arg8: memref<128x128xbf16, #tpu.memory_space<vmem>>, %arg9: memref<1x128xf32, #tpu.memory_space<vmem>>, %arg10: memref<128x128xbf16, #tpu.memory_space<vmem>>, %arg11: memref<1x128xf32, #tpu.memory_space<vmem>>, %arg12: memref<128x32xbf16, #tpu.memory_space<vmem>>, %arg13: memref<1x32xf32, #tpu.memory_space<vmem>>, %arg14: memref<8x32xf32, #tpu.memory_space<vmem>>) attributes {dimension_semantics = [#tpu.dimension_semantics<parallel>], iteration_bounds = array<i64: 1>, scalar_prefetch = 0 : i64, scratch_operands = 0 : i64, tpu.core_type = #tpu.core_type<tc>, window_params = [{transform_indices = @transform_0, window_bounds = array<i64: 8, 32>}, {pipeline_mode = #tpu.pipeline_mode<synchronous>, transform_indices = @transform_1, window_bounds = array<i64: 32, 128>}, {pipeline_mode = #tpu.pipeline_mode<synchronous>, transform_indices = @transform_2, window_bounds = array<i64: 1, 128>}, {pipeline_mode = #tpu.pipeline_mode<synchronous>, transform_indices = @transform_3, window_bounds = array<i64: 128, 128>}, {pipeline_mode = #tpu.pipeline_mode<synchronous>, transform_indices = @transform_4, window_bounds = array<i64: 1, 128>}, {pipeline_mode = #tpu.pipeline_mode<synchronous>, transform_indices = @transform_5, window_bounds = array<i64: 128, 128>}, {pipeline_mode = #tpu.pipeline_mode<synchronous>, transform_indices = @transform_6, window_bounds = array<i64: 1, 128>}, {pipeline_mode = #tpu.pipeline_mode<synchronous>, transform_indices = @transform_7, window_bounds = array<i64: 128, 128>}, {pipeline_mode = #tpu.pipeline_mode<synchronous>, transform_indices = @transform_8, window_bounds = array<i64: 1, 128>}, {pipeline_mode = #tpu.pipeline_mode<synchronous>, transform_indices = @transform_9, window_bounds = array<i64: 128, 128>}, {pipeline_mode = #tpu.pipeline_mode<synchronous>, transform_indices = @transform_10, window_bounds = array<i64: 1, 128>}, {pipeline_mode = #tpu.pipeline_mode<synchronous>, transform_indices = @transform_11, window_bounds = array<i64: 128, 32>}, {pipeline_mode = #tpu.pipeline_mode<synchronous>, transform_indices = @transform_12, window_bounds = array<i64: 1, 32>}, {transform_indices = @transform_13, window_bounds = array<i64: 8, 32>}]} {
    %c0 = arith.constant 0 : index
    %c0_0 = arith.constant 0 : index
    %0 = vector.load %arg1[%c0, %c0_0] : memref<8x32xf32, #tpu.memory_space<vmem>>, vector<8x32xf32>
    %1 = arith.truncf %0 : vector<8x32xf32> to vector<8x32xbf16>
    %c0_1 = arith.constant 0 : index
    %c0_2 = arith.constant 0 : index
    %2 = vector.load %arg2[%c0_1, %c0_2] : memref<32x128xbf16, #tpu.memory_space<vmem>>, vector<32x128xbf16>
    %cst = arith.constant dense<0.000000e+00> : vector<8x128xf32>
    %3 = tpu.matmul %1, %2, %cst {dimension_numbers = #tpu.dot_dimension_numbers<[1], [0], [0], [1], [0, 0, 1, 1], [], []>} : vector<8x32xbf16>, vector<32x128xbf16>, vector<8x128xf32> -> vector<8x128xf32>
    %c0_3 = arith.constant 0 : index
    %c0_4 = arith.constant 0 : index
    %4 = vector.load %arg3[%c0_3, %c0_4] : memref<1x128xf32, #tpu.memory_space<vmem>>, vector<1x128xf32>
    %5 = vector.broadcast %4 : vector<1x128xf32> to vector<8x128xf32>
    %6 = arith.addf %3, %5 : vector<8x128xf32>
    %cst_5 = arith.constant 0.000000e+00 : f32
    %7 = vector.broadcast %cst_5 : f32 to vector<8x128xf32>
    %8 = arith.maximumf %6, %7 : vector<8x128xf32>
    %9 = arith.truncf %8 : vector<8x128xf32> to vector<8x128xbf16>
    %c0_6 = arith.constant 0 : index
    %c0_7 = arith.constant 0 : index
    %10 = vector.load %arg4[%c0_6, %c0_7] : memref<128x128xbf16, #tpu.memory_space<vmem>>, vector<128x128xbf16>
    %cst_8 = arith.constant dense<0.000000e+00> : vector<8x128xf32>
    %11 = tpu.matmul %9, %10, %cst_8 {dimension_numbers = #tpu.dot_dimension_numbers<[1], [0], [0], [1], [0, 0, 1, 1], [], []>} : vector<8x128xbf16>, vector<128x128xbf16>, vector<8x128xf32> -> vector<8x128xf32>
    %c0_9 = arith.constant 0 : index
    %c0_10 = arith.constant 0 : index
    %12 = vector.load %arg5[%c0_9, %c0_10] : memref<1x128xf32, #tpu.memory_space<vmem>>, vector<1x128xf32>
    %13 = vector.broadcast %12 : vector<1x128xf32> to vector<8x128xf32>
    %14 = arith.addf %11, %13 : vector<8x128xf32>
    %cst_11 = arith.constant 0.000000e+00 : f32
    %15 = vector.broadcast %cst_11 : f32 to vector<8x128xf32>
    %16 = arith.maximumf %14, %15 : vector<8x128xf32>
    %17 = arith.truncf %16 : vector<8x128xf32> to vector<8x128xbf16>
    %c0_12 = arith.constant 0 : index
    %c0_13 = arith.constant 0 : index
    %18 = vector.load %arg6[%c0_12, %c0_13] : memref<128x128xbf16, #tpu.memory_space<vmem>>, vector<128x128xbf16>
    %cst_14 = arith.constant dense<0.000000e+00> : vector<8x128xf32>
    %19 = tpu.matmul %17, %18, %cst_14 {dimension_numbers = #tpu.dot_dimension_numbers<[1], [0], [0], [1], [0, 0, 1, 1], [], []>} : vector<8x128xbf16>, vector<128x128xbf16>, vector<8x128xf32> -> vector<8x128xf32>
    %c0_15 = arith.constant 0 : index
    %c0_16 = arith.constant 0 : index
    %20 = vector.load %arg7[%c0_15, %c0_16] : memref<1x128xf32, #tpu.memory_space<vmem>>, vector<1x128xf32>
    %21 = vector.broadcast %20 : vector<1x128xf32> to vector<8x128xf32>
    %22 = arith.addf %19, %21 : vector<8x128xf32>
    %cst_17 = arith.constant 0.000000e+00 : f32
    %23 = vector.broadcast %cst_17 : f32 to vector<8x128xf32>
    %24 = arith.maximumf %22, %23 : vector<8x128xf32>
    %25 = arith.truncf %24 : vector<8x128xf32> to vector<8x128xbf16>
    %c0_18 = arith.constant 0 : index
    %c0_19 = arith.constant 0 : index
    %26 = vector.load %arg8[%c0_18, %c0_19] : memref<128x128xbf16, #tpu.memory_space<vmem>>, vector<128x128xbf16>
    %cst_20 = arith.constant dense<0.000000e+00> : vector<8x128xf32>
    %27 = tpu.matmul %25, %26, %cst_20 {dimension_numbers = #tpu.dot_dimension_numbers<[1], [0], [0], [1], [0, 0, 1, 1], [], []>} : vector<8x128xbf16>, vector<128x128xbf16>, vector<8x128xf32> -> vector<8x128xf32>
    %c0_21 = arith.constant 0 : index
    %c0_22 = arith.constant 0 : index
    %28 = vector.load %arg9[%c0_21, %c0_22] : memref<1x128xf32, #tpu.memory_space<vmem>>, vector<1x128xf32>
    %29 = vector.broadcast %28 : vector<1x128xf32> to vector<8x128xf32>
    %30 = arith.addf %27, %29 : vector<8x128xf32>
    %cst_23 = arith.constant 0.000000e+00 : f32
    %31 = vector.broadcast %cst_23 : f32 to vector<8x128xf32>
    %32 = arith.maximumf %30, %31 : vector<8x128xf32>
    %33 = arith.truncf %32 : vector<8x128xf32> to vector<8x128xbf16>
    %c0_24 = arith.constant 0 : index
    %c0_25 = arith.constant 0 : index
    %34 = vector.load %arg10[%c0_24, %c0_25] : memref<128x128xbf16, #tpu.memory_space<vmem>>, vector<128x128xbf16>
    %cst_26 = arith.constant dense<0.000000e+00> : vector<8x128xf32>
    %35 = tpu.matmul %33, %34, %cst_26 {dimension_numbers = #tpu.dot_dimension_numbers<[1], [0], [0], [1], [0, 0, 1, 1], [], []>} : vector<8x128xbf16>, vector<128x128xbf16>, vector<8x128xf32> -> vector<8x128xf32>
    %c0_27 = arith.constant 0 : index
    %c0_28 = arith.constant 0 : index
    %36 = vector.load %arg11[%c0_27, %c0_28] : memref<1x128xf32, #tpu.memory_space<vmem>>, vector<1x128xf32>
    %37 = vector.broadcast %36 : vector<1x128xf32> to vector<8x128xf32>
    %38 = arith.addf %35, %37 : vector<8x128xf32>
    %cst_29 = arith.constant 0.000000e+00 : f32
    %39 = vector.broadcast %cst_29 : f32 to vector<8x128xf32>
    %40 = arith.maximumf %38, %39 : vector<8x128xf32>
    %41 = arith.truncf %40 : vector<8x128xf32> to vector<8x128xbf16>
    %c0_30 = arith.constant 0 : index
    %c0_31 = arith.constant 0 : index
    %42 = vector.load %arg12[%c0_30, %c0_31] : memref<128x32xbf16, #tpu.memory_space<vmem>>, vector<128x32xbf16>
    %cst_32 = arith.constant dense<0.000000e+00> : vector<8x32xf32>
    %43 = tpu.matmul %41, %42, %cst_32 {dimension_numbers = #tpu.dot_dimension_numbers<[1], [0], [0], [1], [0, 0, 1, 1], [], []>} : vector<8x128xbf16>, vector<128x32xbf16>, vector<8x32xf32> -> vector<8x32xf32>
    %c0_33 = arith.constant 0 : index
    %c0_34 = arith.constant 0 : index
    %44 = vector.load %arg13[%c0_33, %c0_34] : memref<1x32xf32, #tpu.memory_space<vmem>>, vector<1x32xf32>
    %45 = vector.broadcast %44 : vector<1x32xf32> to vector<8x32xf32>
    %46 = arith.addf %43, %45 : vector<8x32xf32>
    %c0_35 = arith.constant 0 : index
    %c0_36 = arith.constant 0 : index
    %47 = vector.load %arg14[%c0_35, %c0_36] : memref<8x32xf32, #tpu.memory_space<vmem>>, vector<8x32xf32>
    tpu.vector_store %arg14[%c0_35, %c0_36], %46 {strides = array<i32>} : memref<8x32xf32, #tpu.memory_space<vmem>>, vector<8x32xf32>,
    return
  }
  func.func @transform_0(%arg0: i32) -> (i32, i32) {
    %c0_i32 = arith.constant 0 : i32
    %c0_i32_0 = arith.constant 0 : i32
    return %arg0, %c0_i32 : i32, i32
  }
  func.func @transform_1(%arg0: i32) -> (i32, i32) {
    %c0_i32 = arith.constant 0 : i32
    %c0_i32_0 = arith.constant 0 : i32
    %c0_i32_1 = arith.constant 0 : i32
    return %c0_i32, %c0_i32_0 : i32, i32
  }
  func.func @transform_2(%arg0: i32) -> (i32, i32) {
    %c0_i32 = arith.constant 0 : i32
    %c0_i32_0 = arith.constant 0 : i32
    %c0_i32_1 = arith.constant 0 : i32
    return %c0_i32, %c0_i32_0 : i32, i32
  }
  func.func @transform_3(%arg0: i32) -> (i32, i32) {
    %c0_i32 = arith.constant 0 : i32
    %c0_i32_0 = arith.constant 0 : i32
    %c0_i32_1 = arith.constant 0 : i32
    return %c0_i32, %c0_i32_0 : i32, i32
  }
  func.func @transform_4(%arg0: i32) -> (i32, i32) {
    %c0_i32 = arith.constant 0 : i32
    %c0_i32_0 = arith.constant 0 : i32
    %c0_i32_1 = arith.constant 0 : i32
    return %c0_i32, %c0_i32_0 : i32, i32
  }
  func.func @transform_5(%arg0: i32) -> (i32, i32) {
    %c0_i32 = arith.constant 0 : i32
    %c0_i32_0 = arith.constant 0 : i32
    %c0_i32_1 = arith.constant 0 : i32
    return %c0_i32, %c0_i32_0 : i32, i32
  }
  func.func @transform_6(%arg0: i32) -> (i32, i32) {
    %c0_i32 = arith.constant 0 : i32
    %c0_i32_0 = arith.constant 0 : i32
    %c0_i32_1 = arith.constant 0 : i32
    return %c0_i32, %c0_i32_0 : i32, i32
  }
  func.func @transform_7(%arg0: i32) -> (i32, i32) {
    %c0_i32 = arith.constant 0 : i32
    %c0_i32_0 = arith.constant 0 : i32
    %c0_i32_1 = arith.constant 0 : i32
    return %c0_i32, %c0_i32_0 : i32, i32
  }
  func.func @transform_8(%arg0: i32) -> (i32, i32) {
    %c0_i32 = arith.constant 0 : i32
    %c0_i32_0 = arith.constant 0 : i32
    %c0_i32_1 = arith.constant 0 : i32
    return %c0_i32, %c0_i32_0 : i32, i32
  }
  func.func @transform_9(%arg0: i32) -> (i32, i32) {
    %c0_i32 = arith.constant 0 : i32
    %c0_i32_0 = arith.constant 0 : i32
    %c0_i32_1 = arith.constant 0 : i32
    return %c0_i32, %c0_i32_0 : i32, i32
  }
  func.func @transform_10(%arg0: i32) -> (i32, i32) {
    %c0_i32 = arith.constant 0 : i32
    %c0_i32_0 = arith.constant 0 : i32
    %c0_i32_1 = arith.constant 0 : i32
    return %c0_i32, %c0_i32_0 : i32, i32
  }
  func.func @transform_11(%arg0: i32) -> (i32, i32) {
    %c0_i32 = arith.constant 0 : i32
    %c0_i32_0 = arith.constant 0 : i32
    %c0_i32_1 = arith.constant 0 : i32
    return %c0_i32, %c0_i32_0 : i32, i32
  }
  func.func @transform_12(%arg0: i32) -> (i32, i32) {
    %c0_i32 = arith.constant 0 : i32
    %c0_i32_0 = arith.constant 0 : i32
    %c0_i32_1 = arith.constant 0 : i32
    return %c0_i32, %c0_i32_0 : i32, i32
  }
  func.func @transform_13(%arg0: i32) -> (i32, i32) {
    %c0_i32 = arith.constant 0 : i32
    %c0_i32_0 = arith.constant 0 : i32
    return %arg0, %c0_i32 : i32, i32
  }
}

</mosaic_0001>

<llo_original>
// kernel: autoencoder_forward.1
$region0: #{autoencoder_forward.1}
  #allocation0 [shape = 'u32[]', space=smem, size = 0x4, offset = 0x4, fixed_abs, tag = 'smem constant byte address 0x4 - core index']
  #allocation1 [shape = 'u32[72,128]{1,0:T(1,128)}', space=vmem, size = 0x9000, scoped, tag = 'internal scratch']
  %s0 = inlined_call_operand.vmem [shape: f32[8,32], index: 0, kind: input, shape index: {}]
  %s1 = inlined_call_operand.vmem [shape: bf16[32,128], index: 1, kind: input, shape index: {}]
  %s2 = inlined_call_operand.vmem [shape: f32[1,128], index: 2, kind: input, shape index: {}]
  %s3 = inlined_call_operand.vmem [shape: bf16[128,128], index: 3, kind: input, shape index: {}]
  %s4 = inlined_call_operand.vmem [shape: f32[1,128], index: 4, kind: input, shape index: {}]
  %s5 = inlined_call_operand.vmem [shape: bf16[128,128], index: 5, kind: input, shape index: {}]
  %s6 = inlined_call_operand.vmem [shape: f32[1,128], index: 6, kind: input, shape index: {}]
  %s7 = inlined_call_operand.vmem [shape: bf16[128,128], index: 7, kind: input, shape index: {}]
  %s8 = inlined_call_operand.vmem [shape: f32[1,128], index: 8, kind: input, shape index: {}]
  %s9 = inlined_call_operand.vmem [shape: bf16[128,128], index: 9, kind: input, shape index: {}]
  %s10 = inlined_call_operand.vmem [shape: f32[1,128], index: 10, kind: input, shape index: {}]
  %s11 = inlined_call_operand.vmem [shape: bf16[128,32], index: 11, kind: input, shape index: {}]
  %s12 = inlined_call_operand.vmem [shape: f32[1,32], index: 12, kind: input, shape index: {}]
  %s13 = inlined_call_operand.hbm [shape: f32[8,32], index: 13, kind: output, shape index: {}]
  %s14 = sld [smem:[#allocation0]]
  $region62: #{autoencoder_forward.1} parent=0
    _
  %s16 = ssub.s32 1, %s14
  %s17 = scalar_select 0, %s16, %s14
  $region1: #{autoencoder_forward.1} parent=0
    #allocation2 [shape = 'u8[4096]{0}', space=vmem, size = 0x1000, scoped, tag = 'output window, operand 0, single buffered']
    #allocation3 [shape = 's32[1]{0}', space=sflag, size = 0x4, scoped, tag = 'scoped memory for autoencoder_forward.1']
    %18 = vsyncpa [#allocation3], 0
    // Predicated region
    $region2: #{autoencoder_forward.1} parent=1 // pred_check
      _
    $region3: #{autoencoder_forward.1} parent=1 // pred_check_branch
      %20 = sbr.rel (0) target = $region5
    $region4: #{autoencoder_forward.1} parent=1 // pred_region
      _
    $region5: #{autoencoder_forward.1} parent=1 // pred_fallthru
      _
    // Predicated region
    $region6: #{autoencoder_forward.1} parent=1 // pred_check
      _
    $region7: #{autoencoder_forward.1} parent=1 // pred_check_branch
      %22 = sbr.rel (0) target = $region9
    $region8: #{autoencoder_forward.1} parent=1 // pred_region
      _
    $region9: #{autoencoder_forward.1} parent=1 // pred_fallthru
      _
    // Predicated region
    $region10: #{autoencoder_forward.1} parent=1 // pred_check
      _
    $region11: #{autoencoder_forward.1} parent=1 // pred_check_branch
      %24 = sbr.rel (0) target = $region13
    $region12: #{autoencoder_forward.1} parent=1 // pred_region
      _
    $region13: #{autoencoder_forward.1} parent=1 // pred_fallthru
      _
    // Predicated region
    $region14: #{autoencoder_forward.1} parent=1 // pred_check
      _
    $region15: #{autoencoder_forward.1} parent=1 // pred_check_branch
      %26 = sbr.rel (0) target = $region17
    $region16: #{autoencoder_forward.1} parent=1 // pred_region
      _
    $region17: #{autoencoder_forward.1} parent=1 // pred_fallthru
      _
    // Predicated region
    $region18: #{autoencoder_forward.1} parent=1 // pred_check
      _
    $region19: #{autoencoder_forward.1} parent=1 // pred_check_branch
      %28 = sbr.rel (0) target = $region21
    $region20: #{autoencoder_forward.1} parent=1 // pred_region
      _
    $region21: #{autoencoder_forward.1} parent=1 // pred_fallthru
      _
    // Predicated region
    $region22: #{autoencoder_forward.1} parent=1 // pred_check
      _
    $region23: #{autoencoder_forward.1} parent=1 // pred_check_branch
      %30 = sbr.rel (0) target = $region25
    $region24: #{autoencoder_forward.1} parent=1 // pred_region
      _
    $region25: #{autoencoder_forward.1} parent=1 // pred_fallthru
      _
    // Predicated region
    $region26: #{autoencoder_forward.1} parent=1 // pred_check
      _
    $region27: #{autoencoder_forward.1} parent=1 // pred_check_branch
      %32 = sbr.rel (0) target = $region29
    $region28: #{autoencoder_forward.1} parent=1 // pred_region
      _
    $region29: #{autoencoder_forward.1} parent=1 // pred_fallthru
      _
    // Predicated region
    $region30: #{autoencoder_forward.1} parent=1 // pred_check
      _
    $region31: #{autoencoder_forward.1} parent=1 // pred_check_branch
      %34 = sbr.rel (0) target = $region33
    $region32: #{autoencoder_forward.1} parent=1 // pred_region
      _
    $region33: #{autoencoder_forward.1} parent=1 // pred_fallthru
      _
    // Predicated region
    $region34: #{autoencoder_forward.1} parent=1 // pred_check
      _
    $region35: #{autoencoder_forward.1} parent=1 // pred_check_branch
      %36 = sbr.rel (0) target = $region37
    $region36: #{autoencoder_forward.1} parent=1 // pred_region
      _
    $region37: #{autoencoder_forward.1} parent=1 // pred_fallthru
      _
    // Predicated region
    $region38: #{autoencoder_forward.1} parent=1 // pred_check
      _
    $region39: #{autoencoder_forward.1} parent=1 // pred_check_branch
      %38 = sbr.rel (0) target = $region41
    $region40: #{autoencoder_forward.1} parent=1 // pred_region
      _
    $region41: #{autoencoder_forward.1} parent=1 // pred_fallthru
      _
    // Predicated region
    $region42: #{autoencoder_forward.1} parent=1 // pred_check
      _
    $region43: #{autoencoder_forward.1} parent=1 // pred_check_branch
      %40 = sbr.rel (0) target = $region45
    $region44: #{autoencoder_forward.1} parent=1 // pred_region
      _
    $region45: #{autoencoder_forward.1} parent=1 // pred_fallthru
      _
    // Predicated region
    $region46: #{autoencoder_forward.1} parent=1 // pred_check
      _
    $region47: #{autoencoder_forward.1} parent=1 // pred_check_branch
      %42 = sbr.rel (0) target = $region49
    $region48: #{autoencoder_forward.1} parent=1 // pred_region
      _
    $region49: #{autoencoder_forward.1} parent=1 // pred_fallthru
      _
    // Predicated region
    $region50: #{autoencoder_forward.1} parent=1 // pred_check
      _
    $region51: #{autoencoder_forward.1} parent=1 // pred_check_branch
      %44 = sbr.rel (0) target = $region53
    $region52: #{autoencoder_forward.1} parent=1 // pred_region
      _
    $region53: #{autoencoder_forward.1} parent=1 // pred_fallthru
      _
    %v46 = vld [vmem:[%s0] sm:$0xff]
    %v47 = vpack.c.bf16 %v46, %v46
    %v48 = vld [vmem:[%s1] sm:$0xf]
    %v49 = vld [vmem:[%s1 + $0x4] sm:$0xf]
    %v50 = vld [vmem:[%s1 + $0x8] sm:$0xf]
    %v51 = vld [vmem:[%s1 + $0xc] sm:$0xf]
    %v52 = vld [vmem:[%s2] sm:$0x1]
    %v54 = vperm.slane %v52, 0
    %v60 = vunpack.c.l.b16 %v48
    %v61 = vunpack.c.l.b16 %v49
    %v62 = vunpack.c.l.b16 %v50
    %v63 = vunpack.c.l.b16 %v51
    %v64 = vpack.c.b16 %v61, %v60
    %v65 = vpack.c.b16 %v63, %v62
    %vm68 = vcmask 261120
    %v70 = vsel %vm68, %v47, 0
    %72 = vmatpush.bf16.msra.mxu0 0
    %73 = vmatpush.bf16.msra.mxu0 0
    %74 = vmatpush.bf16.msra.mxu0 0
    %75 = vmatpush.bf16.msra.mxu0 0
    %76 = vmatpush.bf16.msra.mxu0 0
    %77 = vmatpush.bf16.msra.mxu0 0
    %78 = vmatpush.bf16.msra.mxu0 %v65
    %79 = vmatpush.bf16.msra.mxu0 %v64
    %80 = vmatmul.bf16.gmra.mxu0 %v70
    %v81 = vpop.f32.mrf.mxu0
    %v82 = vadd.f32 %v54, %v81
    %v83 = vpop.f32.mrf.mxu0
    %84 = vdwg.mxu0
    %v85 = vmax.f32 %v82, 0.0
    %v86 = vpack.c.bf16 %v85, %v85
    %v87 = vld [vmem:[%s3] sm:$0xf]
    %v88 = vld [vmem:[%s3 + $0x4] sm:$0xf]
    %v89 = vld [vmem:[%s3 + $0x8] sm:$0xf]
    %v90 = vld [vmem:[%s3 + $0xc] sm:$0xf]
    %v91 = vld [vmem:[%s3 + $0x10] sm:$0xf]
    %v92 = vld [vmem:[%s3 + $0x14] sm:$0xf]
    %v93 = vld [vmem:[%s3 + $0x18] sm:$0xf]
    %v94 = vld [vmem:[%s3 + $0x1c] sm:$0xf]
    %v95 = vld [vmem:[%s3 + $0x20] sm:$0xf]
    %v96 = vld [vmem:[%s3 + $0x24] sm:$0xf]
    %v97 = vld [vmem:[%s3 + $0x28] sm:$0xf]
    %v98 = vld [vmem:[%s3 + $0x2c] sm:$0xf]
    %v99 = vld [vmem:[%s3 + $0x30] sm:$0xf]
    %v100 = vld [vmem:[%s3 + $0x34] sm:$0xf]
    %v101 = vld [vmem:[%s3 + $0x38] sm:$0xf]
    %v102 = vld [vmem:[%s3 + $0x3c] sm:$0xf]
    %v103 = vld [vmem:[%s4] sm:$0x1]
    %v105 = vperm.slane %v103, 0
    %v123 = vunpack.c.l.b16 %v87
    %v124 = vunpack.c.l.b16 %v88
    %v125 = vunpack.c.l.b16 %v89
    %v126 = vunpack.c.l.b16 %v90
    %v127 = vunpack.c.l.b16 %v91
    %v128 = vunpack.c.l.b16 %v92
    %v129 = vunpack.c.l.b16 %v93
    %v130 = vunpack.c.l.b16 %v94
    %v131 = vunpack.c.l.b16 %v95
    %v132 = vunpack.c.l.b16 %v96
    %v133 = vunpack.c.l.b16 %v97
    %v134 = vunpack.c.l.b16 %v98
    %v135 = vunpack.c.l.b16 %v99
    %v136 = vunpack.c.l.b16 %v100
    %v137 = vunpack.c.l.b16 %v101
    %v138 = vunpack.c.l.b16 %v102
    %v139 = vpack.c.b16 %v124, %v123
    %v140 = vpack.c.b16 %v126, %v125
    %v141 = vpack.c.b16 %v128, %v127
    %v142 = vpack.c.b16 %v130, %v129
    %v143 = vpack.c.b16 %v132, %v131
    %v144 = vpack.c.b16 %v134, %v133
    %v145 = vpack.c.b16 %v136, %v135
    %v146 = vpack.c.b16 %v138, %v137
    %155 = vmatpush.bf16.msra.mxu0 %v146
    %156 = vmatpush.bf16.msra.mxu0 %v145
    %157 = vmatpush.bf16.msra.mxu0 %v144
    %158 = vmatpush.bf16.msra.mxu0 %v143
    %159 = vmatpush.bf16.msra.mxu0 %v142
    %160 = vmatpush.bf16.msra.mxu0 %v141
    %161 = vmatpush.bf16.msra.mxu0 %v140
    %162 = vmatpush.bf16.msra.mxu0 %v139
    %163 = vmatmul.bf16.gmra.mxu0 %v86
    %v164 = vpop.f32.mrf.mxu0
    %v165 = vadd.f32 %v105, %v164
    %v166 = vpop.f32.mrf.mxu0
    %167 = vdwg.mxu0
    %v168 = vmax.f32 %v165, 0.0
    %v169 = vpack.c.bf16 %v168, %v168
    %v170 = vld [vmem:[%s5] sm:$0xf]
    %v171 = vld [vmem:[%s5 + $0x4] sm:$0xf]
    %v172 = vld [vmem:[%s5 + $0x8] sm:$0xf]
    %v173 = vld [vmem:[%s5 + $0xc] sm:$0xf]
    %v174 = vld [vmem:[%s5 + $0x10] sm:$0xf]
    %v175 = vld [vmem:[%s5 + $0x14] sm:$0xf]
    %v176 = vld [vmem:[%s5 + $0x18] sm:$0xf]
    %v177 = vld [vmem:[%s5 + $0x1c] sm:$0xf]
    %v178 = vld [vmem:[%s5 + $0x20] sm:$0xf]
    %v179 = vld [vmem:[%s5 + $0x24] sm:$0xf]
    %v180 = vld [vmem:[%s5 + $0x28] sm:$0xf]
    %v181 = vld [vmem:[%s5 + $0x2c] sm:$0xf]
    %v182 = vld [vmem:[%s5 + $0x30] sm:$0xf]
    %v183 = vld [vmem:[%s5 + $0x34] sm:$0xf]
    %v184 = vld [vmem:[%s5 + $0x38] sm:$0xf]
    %v185 = vld [vmem:[%s5 + $0x3c] sm:$0xf]
    %v186 = vld [vmem:[%s6] sm:$0x1]
    %v188 = vperm.slane %v186, 0
    %v206 = vunpack.c.l.b16 %v170
    %v207 = vunpack.c.l.b16 %v171
    %v208 = vunpack.c.l.b16 %v172
    %v209 = vunpack.c.l.b16 %v173
    %v210 = vunpack.c.l.b16 %v174
    %v211 = vunpack.c.l.b16 %v175
    %v212 = vunpack.c.l.b16 %v176
    %v213 = vunpack.c.l.b16 %v177
    %v214 = vunpack.c.l.b16 %v178
    %v215 = vunpack.c.l.b16 %v179
    %v216 = vunpack.c.l.b16 %v180
    %v217 = vunpack.c.l.b16 %v181
    %v218 = vunpack.c.l.b16 %v182
    %v219 = vunpack.c.l.b16 %v183
    %v220 = vunpack.c.l.b16 %v184
    %v221 = vunpack.c.l.b16 %v185
    %v222 = vpack.c.b16 %v207, %v206
    %v223 = vpack.c.b16 %v209, %v208
    %v224 = vpack.c.b16 %v211, %v210
    %v225 = vpack.c.b16 %v213, %v212
    %v226 = vpack.c.b16 %v215, %v214
    %v227 = vpack.c.b16 %v217, %v216
    %v228 = vpack.c.b16 %v219, %v218
    %v229 = vpack.c.b16 %v221, %v220
    %238 = vmatpush.bf16.msra.mxu0 %v229
    %239 = vmatpush.bf16.msra.mxu0 %v228
    %240 = vmatpush.bf16.msra.mxu0 %v227
    %241 = vmatpush.bf16.msra.mxu0 %v226
    %242 = vmatpush.bf16.msra.mxu0 %v225
    %243 = vmatpush.bf16.msra.mxu0 %v224
    %244 = vmatpush.bf16.msra.mxu0 %v223
    %245 = vmatpush.bf16.msra.mxu0 %v222
    %246 = vmatmul.bf16.gmra.mxu0 %v169
    %v247 = vpop.f32.mrf.mxu0
    %v248 = vadd.f32 %v188, %v247
    %v249 = vpop.f32.mrf.mxu0
    %250 = vdwg.mxu0
    %v251 = vmax.f32 %v248, 0.0
    %v252 = vpack.c.bf16 %v251, %v251
    %v253 = vld [vmem:[%s7] sm:$0xf]
    %v254 = vld [vmem:[%s7 + $0x4] sm:$0xf]
    %v255 = vld [vmem:[%s7 + $0x8] sm:$0xf]
    %v256 = vld [vmem:[%s7 + $0xc] sm:$0xf]
    %v257 = vld [vmem:[%s7 + $0x10] sm:$0xf]
    %v258 = vld [vmem:[%s7 + $0x14] sm:$0xf]
    %v259 = vld [vmem:[%s7 + $0x18] sm:$0xf]
    %v260 = vld [vmem:[%s7 + $0x1c] sm:$0xf]
    %v261 = vld [vmem:[%s7 + $0x20] sm:$0xf]
    %v262 = vld [vmem:[%s7 + $0x24] sm:$0xf]
    %v263 = vld [vmem:[%s7 + $0x28] sm:$0xf]
    %v264 = vld [vmem:[%s7 + $0x2c] sm:$0xf]
    %v265 = vld [vmem:[%s7 + $0x30] sm:$0xf]
    %v266 = vld [vmem:[%s7 + $0x34] sm:$0xf]
    %v267 = vld [vmem:[%s7 + $0x38] sm:$0xf]
    %v268 = vld [vmem:[%s7 + $0x3c] sm:$0xf]
    %v269 = vld [vmem:[%s8] sm:$0x1]
    %v271 = vperm.slane %v269, 0
    %v289 = vunpack.c.l.b16 %v253
    %v290 = vunpack.c.l.b16 %v254
    %v291 = vunpack.c.l.b16 %v255
    %v292 = vunpack.c.l.b16 %v256
    %v293 = vunpack.c.l.b16 %v257
    %v294 = vunpack.c.l.b16 %v258
    %v295 = vunpack.c.l.b16 %v259
    %v296 = vunpack.c.l.b16 %v260
    %v297 = vunpack.c.l.b16 %v261
    %v298 = vunpack.c.l.b16 %v262
    %v299 = vunpack.c.l.b16 %v263
    %v300 = vunpack.c.l.b16 %v264
    %v301 = vunpack.c.l.b16 %v265
    %v302 = vunpack.c.l.b16 %v266
    %v303 = vunpack.c.l.b16 %v267
    %v304 = vunpack.c.l.b16 %v268
    %v305 = vpack.c.b16 %v290, %v289
    %v306 = vpack.c.b16 %v292, %v291
    %v307 = vpack.c.b16 %v294, %v293
    %v308 = vpack.c.b16 %v296, %v295
    %v309 = vpack.c.b16 %v298, %v297
    %v310 = vpack.c.b16 %v300, %v299
    %v311 = vpack.c.b16 %v302, %v301
    %v312 = vpack.c.b16 %v304, %v303
    %321 = vmatpush.bf16.msra.mxu0 %v312
    %322 = vmatpush.bf16.msra.mxu0 %v311
    %323 = vmatpush.bf16.msra.mxu0 %v310
    %324 = vmatpush.bf16.msra.mxu0 %v309
    %325 = vmatpush.bf16.msra.mxu0 %v308
    %326 = vmatpush.bf16.msra.mxu0 %v307
    %327 = vmatpush.bf16.msra.mxu0 %v306
    %328 = vmatpush.bf16.msra.mxu0 %v305
    %329 = vmatmul.bf16.gmra.mxu0 %v252
    %v330 = vpop.f32.mrf.mxu0
    %v331 = vadd.f32 %v271, %v330
    %v332 = vpop.f32.mrf.mxu0
    %333 = vdwg.mxu0
    %v334 = vmax.f32 %v331, 0.0
    %v335 = vpack.c.bf16 %v334, %v334
    %v336 = vld [vmem:[%s9] sm:$0xf]
    %v337 = vld [vmem:[%s9 + $0x4] sm:$0xf]
    %v338 = vld [vmem:[%s9 + $0x8] sm:$0xf]
    %v339 = vld [vmem:[%s9 + $0xc] sm:$0xf]
    %v340 = vld [vmem:[%s9 + $0x10] sm:$0xf]
    %v341 = vld [vmem:[%s9 + $0x14] sm:$0xf]
    %v342 = vld [vmem:[%s9 + $0x18] sm:$0xf]
    %v343 = vld [vmem:[%s9 + $0x1c] sm:$0xf]
    %v344 = vld [vmem:[%s9 + $0x20] sm:$0xf]
    %v345 = vld [vmem:[%s9 + $0x24] sm:$0xf]
    %v346 = vld [vmem:[%s9 + $0x28] sm:$0xf]
    %v347 = vld [vmem:[%s9 + $0x2c] sm:$0xf]
    %v348 = vld [vmem:[%s9 + $0x30] sm:$0xf]
    %v349 = vld [vmem:[%s9 + $0x34] sm:$0xf]
    %v350 = vld [vmem:[%s9 + $0x38] sm:$0xf]
    %v351 = vld [vmem:[%s9 + $0x3c] sm:$0xf]
    %v352 = vld [vmem:[%s10] sm:$0x1]
    %v354 = vperm.slane %v352, 0
    %v372 = vunpack.c.l.b16 %v336
    %v373 = vunpack.c.l.b16 %v337
    %v374 = vunpack.c.l.b16 %v338
    %v375 = vunpack.c.l.b16 %v339
    %v376 = vunpack.c.l.b16 %v340
    %v377 = vunpack.c.l.b16 %v341
    %v378 = vunpack.c.l.b16 %v342
    %v379 = vunpack.c.l.b16 %v343
    %v380 = vunpack.c.l.b16 %v344
    %v381 = vunpack.c.l.b16 %v345
    %v382 = vunpack.c.l.b16 %v346
    %v383 = vunpack.c.l.b16 %v347
    %v384 = vunpack.c.l.b16 %v348
    %v385 = vunpack.c.l.b16 %v349
    %v386 = vunpack.c.l.b16 %v350
    %v387 = vunpack.c.l.b16 %v351
    %v388 = vpack.c.b16 %v373, %v372
    %v389 = vpack.c.b16 %v375, %v374
    %v390 = vpack.c.b16 %v377, %v376
    %v391 = vpack.c.b16 %v379, %v378
    %v392 = vpack.c.b16 %v381, %v380
    %v393 = vpack.c.b16 %v383, %v382
    %v394 = vpack.c.b16 %v385, %v384
    %v395 = vpack.c.b16 %v387, %v386
    %404 = vmatpush.bf16.msra.mxu0 %v395
    %405 = vmatpush.bf16.msra.mxu0 %v394
    %406 = vmatpush.bf16.msra.mxu0 %v393
    %407 = vmatpush.bf16.msra.mxu0 %v392
    %408 = vmatpush.bf16.msra.mxu0 %v391
    %409 = vmatpush.bf16.msra.mxu0 %v390
    %410 = vmatpush.bf16.msra.mxu0 %v389
    %411 = vmatpush.bf16.msra.mxu0 %v388
    %412 = vmatmul.bf16.gmra.mxu0 %v335
    %v413 = vpop.f32.mrf.mxu0
    %v414 = vadd.f32 %v354, %v413
    %v415 = vpop.f32.mrf.mxu0
    %416 = vdwg.mxu0
    %v417 = vmax.f32 %v414, 0.0
    %v418 = vpack.c.bf16 %v417, %v417
    %v419 = vld [vmem:[%s11] sm:$0xf]
    %v420 = vld [vmem:[%s11 + $0x4] sm:$0xf]
    %v421 = vld [vmem:[%s11 + $0x8] sm:$0xf]
    %v422 = vld [vmem:[%s11 + $0xc] sm:$0xf]
    %v423 = vld [vmem:[%s11 + $0x10] sm:$0xf]
    %v424 = vld [vmem:[%s11 + $0x14] sm:$0xf]
    %v425 = vld [vmem:[%s11 + $0x18] sm:$0xf]
    %v426 = vld [vmem:[%s11 + $0x1c] sm:$0xf]
    %v427 = vld [vmem:[%s11 + $0x20] sm:$0xf]
    %v428 = vld [vmem:[%s11 + $0x24] sm:$0xf]
    %v429 = vld [vmem:[%s11 + $0x28] sm:$0xf]
    %v430 = vld [vmem:[%s11 + $0x2c] sm:$0xf]
    %v431 = vld [vmem:[%s11 + $0x30] sm:$0xf]
    %v432 = vld [vmem:[%s11 + $0x34] sm:$0xf]
    %v433 = vld [vmem:[%s11 + $0x38] sm:$0xf]
    %v434 = vld [vmem:[%s11 + $0x3c] sm:$0xf]
    %v435 = vld [vmem:[%s12] sm:$0x1]
    %v437 = vperm.slane %v435, 0
    %v455 = vunpack.c.l.b16 %v419
    %v456 = vunpack.c.l.b16 %v420
    %v457 = vunpack.c.l.b16 %v421
    %v458 = vunpack.c.l.b16 %v422
    %v459 = vunpack.c.l.b16 %v423
    %v460 = vunpack.c.l.b16 %v424
    %v461 = vunpack.c.l.b16 %v425
    %v462 = vunpack.c.l.b16 %v426
    %v463 = vunpack.c.l.b16 %v427
    %v464 = vunpack.c.l.b16 %v428
    %v465 = vunpack.c.l.b16 %v429
    %v466 = vunpack.c.l.b16 %v430
    %v467 = vunpack.c.l.b16 %v431
    %v468 = vunpack.c.l.b16 %v432
    %v469 = vunpack.c.l.b16 %v433
    %v470 = vunpack.c.l.b16 %v434
    %v471 = vpack.c.b16 %v456, %v455
    %v472 = vpack.c.b16 %v458, %v457
    %v473 = vpack.c.b16 %v460, %v459
    %v474 = vpack.c.b16 %v462, %v461
    %v475 = vpack.c.b16 %v464, %v463
    %v476 = vpack.c.b16 %v466, %v465
    %v477 = vpack.c.b16 %v468, %v467
    %v478 = vpack.c.b16 %v470, %v469
    %487 = vmatpush.bf16.msra.mxu0 %v478
    %488 = vmatpush.bf16.msra.mxu0 %v477
    %489 = vmatpush.bf16.msra.mxu0 %v476
    %490 = vmatpush.bf16.msra.mxu0 %v475
    %491 = vmatpush.bf16.msra.mxu0 %v474
    %492 = vmatpush.bf16.msra.mxu0 %v473
    %493 = vmatpush.bf16.msra.mxu0 %v472
    %494 = vmatpush.bf16.msra.mxu0 %v471
    %495 = vmatmul.bf16.gmra.mxu0 %v418
    %v496 = vpop.f32.mrf.mxu0
    %v497 = vadd.f32 %v437, %v496
    %v498 = vpop.f32.mrf.mxu0
    %499 = vdwg.mxu0
    %500 = vst.msk [vmem:[#allocation2] sm:$0xff] %vm68, %v497
    // Predicated region
    $region54: #{autoencoder_forward.1} parent=1 // pred_check
      _
    $region55: #{autoencoder_forward.1} parent=1 // pred_check_branch
      %502 = sbr.rel (0) target = $region57
    $region56: #{autoencoder_forward.1} parent=1 // pred_region
      %504 = vsyncadd [#allocation3], 0
      %s506 = sshll.u32 [#allocation2], 4
      %s507 = int_to_ptr.vmem [resolvable:$true] %s506
      %s508 = sshll.u32 %s13, 4
      %s509 = int_to_ptr.hbm [resolvable:$true] %s508
      %511 = dma.vmem_to_hbm [thread:$0]  %s507, 128, %s509, [#allocation3]
    $region57: #{autoencoder_forward.1} parent=1 // pred_fallthru
      _
    // Predicated region
    $region58: #{autoencoder_forward.1} parent=1 // pred_check
      _
    $region59: #{autoencoder_forward.1} parent=1 // pred_check_branch
      %513 = sbr.rel (0) target = $region61
    $region60: #{autoencoder_forward.1} parent=1 // pred_region
      %515 = dma.done [#allocation3], 128
    $region61: #{autoencoder_forward.1} parent=1 // pred_fallthru
      _
    %516 = vsyncpa [#allocation3], 1

</llo_original>
